<compile_context>
chip_gen: v6e
topology: v6e:2x2x1
jax: 0.10.0
libtpu: 0.0.40
codegen_flags: <defaults>
</compile_context>

<pallas_src>
import functools

import jax
import jax.numpy as jnp
from jax.experimental import pallas as pl
from jax.experimental.pallas import tpu as pltpu

C_PAD = 128  # lane-dense channel padding for features / hidden / output


def _sage_layer_kernel(x_ref, adjn_ref, wl_ref, wr_ref, b_ref, out_ref, *,
                       tile_m, valid_out, apply_relu, apply_log_softmax):
    """One SAGEConv (mean aggregation) layer for a tile of TM rows.

    x_ref    : [N, C]    bf16  resident node features (full graph)
    adjn_ref : [TM, N]   bf16  adjacency rows of this tile, pre-scaled by 1/deg
    wl_ref   : [C, Cout] bf16  neighbour (lin_l) weight, zero-padded
    wr_ref   : [C, Cout] bf16  root (lin_r) weight, zero-padded
    b_ref    : [1, Cout] f32   bias
    out_ref  : [TM, Cout]
    """
    i = pl.program_id(0)

    # mean aggregation: adj rows already carry 1/deg -> one bf16 MXU matmul, f32 acc.
    agg = jnp.dot(adjn_ref[...], x_ref[...],
                  preferred_element_type=jnp.float32)               # [TM, C] f32

    # rows of this tile for the self (root) term
    row0 = pl.multiple_of(i * tile_m, tile_m)
    x_tile = x_ref[pl.ds(row0, tile_m), :]                          # [TM, C] bf16

    # projection: lin_l(agg) + lin_r(x) + b  -- two accumulated bf16 MXU matmuls
    o = (jnp.dot(agg.astype(jnp.bfloat16), wl_ref[...],
                 preferred_element_type=jnp.float32)
         + jnp.dot(x_tile, wr_ref[...], preferred_element_type=jnp.float32)
         + b_ref[...])                                              # [TM, Cout] f32

    if apply_relu:
        o = jnp.maximum(o, 0.0)
        # TODO(synk): dropout(p=0.05) is identity in eval mode; a training-mode
        # version needs pltpu.prng_seed / pltpu.prng_random_bits here.

    if apply_log_softmax:
        # mask zero-padded lanes so they do not pollute the softmax
        col = jax.lax.broadcasted_iota(jnp.int32, o.shape, 1)
        o = jnp.where(col < valid_out, o, jnp.float32(-1e30))
        m = jnp.max(o, axis=-1, keepdims=True)
        z = o - m
        lse = jnp.log(jnp.sum(jnp.exp(z), axis=-1, keepdims=True))
        o = z - lse

    out_ref[...] = o.astype(out_ref.dtype)


def _vmem_cap_bytes():
    # ~96 MiB on v5e/v6e (128 MiB physical VMEM), ~48 MiB on v7x (64 MiB physical).
    try:
        return int(pltpu.get_tpu_info().vmem_capacity_bytes * 3 // 4)
    except Exception:
        return 48 << 20


def _pick_tile(n_pad, requested=None):
    if requested is not None:
        assert n_pad % requested == 0 and (requested % 16 == 0 or requested == n_pad)
        return requested
    # Largest tile <= 512 that divides n_pad while keeping the row grid >= 2
    # (so both TensorCores of a v7x chip get work).
    for t in (512, 256, 128, 64, 32, 16):
        if n_pad % t == 0 and n_pad // t >= 2:
            return t
    return n_pad


def _sage_conv(x_full, adj_norm, w_l, w_r, b, *, valid_out, apply_relu,
               apply_log_softmax, out_dtype, tile_m):
    n, c_in = x_full.shape
    c_out = w_l.shape[1]
    assert n % tile_m == 0
    grid = (n // tile_m,)

    kernel = functools.partial(
        _sage_layer_kernel, tile_m=tile_m, valid_out=valid_out,
        apply_relu=apply_relu, apply_log_softmax=apply_log_softmax)

    out_itemsize = jnp.dtype(out_dtype).itemsize
    cost = pl.CostEstimate(
        flops=2 * n * n * c_in + 2 * 2 * n * c_in * c_out,
        transcendentals=n * (c_out + 1) if apply_log_softmax else 0,
        bytes_accessed=(adj_norm.size * 2 + x_full.size * 2
                        + (w_l.size + w_r.size) * 2 + b.size * 4
                        + n * c_out * out_itemsize),
    )

    # VMEM budget: Pallas double-buffers EVERY input by default, including the
    # "resident" x / weights whose block never changes, so count 2x for all of them.
    # TODO(synk): single-buffer the resident inputs (pipeline_mode=pl.Buffered(1)) and
    # add a K-tiled accumulator path for very large N on v7x's 64 MiB VMEM.
    vmem_need = 2 * (tile_m * n * 2              # adj_norm tile, bf16
                     + n * c_in * 2              # resident features, bf16
                     + 2 * c_in * c_out * 2      # W_l + W_r, bf16
                     + c_out * 4                 # bias, f32
                     + tile_m * c_out * out_itemsize)   # output tile
    vmem_limit = min(int(vmem_need * 1.5) + (8 << 20), _vmem_cap_bytes())

    return pl.pallas_call(
        kernel,
        out_shape=jax.ShapeDtypeStruct((n, c_out), out_dtype),
        grid=grid,
        in_specs=[
            pl.BlockSpec((n, c_in), lambda i: (0, 0)),        # x: resident
            pl.BlockSpec((tile_m, n), lambda i: (i, 0)),      # adj_norm: row-tiled
            pl.BlockSpec((c_in, c_out), lambda i: (0, 0)),    # W_l (lin_l)
            pl.BlockSpec((c_in, c_out), lambda i: (0, 0)),    # W_r (lin_r)
            pl.BlockSpec((1, c_out), lambda i: (0, 0)),       # bias
        ],
        out_specs=pl.BlockSpec((tile_m, c_out), lambda i: (i, 0)),
        compiler_params=pltpu.CompilerParams(
            dimension_semantics=("parallel",),
            vmem_limit_bytes=vmem_limit),
        cost_estimate=cost,
    )(x_full, adj_norm, w_l, w_r, b)


def graphsage_forward(x, adj, params, *, tile_m=None):
    n, in_c = x.shape
    h_c = params["w1l"].shape[1]
    out_c = params["w2l"].shape[1]
    assert max(in_c, h_c, out_c) <= C_PAD

    def pad2(a, rows, cols, dtype):
        a = jnp.pad(a, ((0, rows - a.shape[0]), (0, cols - a.shape[1])))
        return a.astype(dtype)

    # Host-side one-time prep:
    #   * zero-pad N to a multiple of 128 and channels to lane-dense 128,
    #   * fold the mean-aggregation 1/deg into the adjacency rows (degree never
    #     recomputed in-kernel),
    #   * everything feeding the MXU goes to bf16 (f32 accumulation in-kernel).
    n_pad = ((n + 127) // 128) * 128
    tile = _pick_tile(n_pad, tile_m)

    adj_f32 = adj.astype(jnp.float32)
    deg = jnp.maximum(jnp.sum(adj_f32, axis=-1, keepdims=True), 1.0)
    adj_norm = pad2(adj_f32 / deg, n_pad, n_pad, jnp.bfloat16)

    x_pad = pad2(x.astype(jnp.float32), n_pad, C_PAD, jnp.bfloat16)
    w1l = pad2(params["w1l"], C_PAD, C_PAD, jnp.bfloat16)
    w1r = pad2(params["w1r"], C_PAD, C_PAD, jnp.bfloat16)
    w2l = pad2(params["w2l"], C_PAD, C_PAD, jnp.bfloat16)
    w2r = pad2(params["w2r"], C_PAD, C_PAD, jnp.bfloat16)
    b1 = pad2(params["b1"], 1, C_PAD, jnp.float32)
    b2 = pad2(params["b2"], 1, C_PAD, jnp.float32)

    h = _sage_conv(x_pad, adj_norm, w1l, w1r, b1, valid_out=h_c,
                   apply_relu=True, apply_log_softmax=False,
                   out_dtype=jnp.bfloat16, tile_m=tile)   # h stays bf16 between layers
    o = _sage_conv(h, adj_norm, w2l, w2r, b2, valid_out=out_c,
                   apply_relu=False, apply_log_softmax=True,
                   out_dtype=jnp.float32, tile_m=tile)
    return o[:n, :out_c]


def init_params(key, in_c, h_c, out_c):
    ks = jax.random.split(key, 4)

    def glorot(k, fan_in, fan_out):
        lim = (6.0 / (fan_in + fan_out)) ** 0.5
        return jax.random.uniform(k, (fan_in, fan_out), jnp.float32, -lim, lim)

    return {
        "w1l": glorot(ks[0], in_c, h_c),
        "w1r": glorot(ks[1], in_c, h_c),
        "b1": jnp.zeros((1, h_c), jnp.float32),
        "w2l": glorot(ks[2], h_c, out_c),
        "w2r": glorot(ks[3], h_c, out_c),
        "b2": jnp.zeros((1, out_c), jnp.float32),
    }


def reference_forward(x, adj, p):
    deg = jnp.maximum(jnp.sum(adj, axis=-1, keepdims=True), 1.0)
    agg1 = (adj @ x) / deg
    h = jax.nn.relu(agg1 @ p["w1l"] + p["b1"] + x @ p["w1r"])
    agg2 = (adj @ h) / deg
    o = agg2 @ p["w2l"] + p["b2"] + h @ p["w2r"]
    return jax.nn.log_softmax(o, axis=-1)


if __name__ == "__main__":
    N, in_c, h_c, out_c = 128, 16, 32, 8

    key = jax.random.PRNGKey(0)
    k_x, k_adj, k_p = jax.random.split(key, 3)

    x = jax.random.normal(k_x, (N, in_c), jnp.float32)
    # random sparse-ish symmetric adjacency, no self-loops
    a = (jax.random.uniform(k_adj, (N, N)) < 0.05).astype(jnp.float32)
    adj = jnp.clip(a + a.T, 0.0, 1.0)
    adj = adj * (1.0 - jnp.eye(N, dtype=jnp.float32))

    params = init_params(k_p, in_c, h_c, out_c)

    out = graphsage_forward(x, adj, params)
    jax.block_until_ready(out)

    ref = reference_forward(x, adj, params)
    assert out.shape == (N, out_c)
    # bf16 aggregation / features / weights / inter-layer h -> loosened tolerance
    assert jnp.allclose(out, ref, atol=5e-2, rtol=5e-2), float(jnp.max(jnp.abs(out - ref)))

    print("KERNEL_OK")
</pallas_src>

<mosaic_0001>
module attributes {stable_mosaic.version = 11 : i64} {
  func.func @_sage_layer_kernel(%arg0: i32, %arg1: memref<128x128xbf16, #tpu.memory_space<vmem>>, %arg2: memref<64x128xbf16, #tpu.memory_space<vmem>>, %arg3: memref<128x128xbf16, #tpu.memory_space<vmem>>, %arg4: memref<128x128xbf16, #tpu.memory_space<vmem>>, %arg5: memref<1x128xf32, #tpu.memory_space<vmem>>, %arg6: memref<64x128xbf16, #tpu.memory_space<vmem>>) attributes {dimension_semantics = [#tpu.dimension_semantics<parallel>], iteration_bounds = array<i64: 2>, scalar_prefetch = 0 : i64, scratch_operands = 0 : i64, tpu.core_type = #tpu.core_type<tc>, window_params = [{pipeline_mode = #tpu.pipeline_mode<synchronous>, transform_indices = @transform_0, window_bounds = array<i64: 128, 128>}, {transform_indices = @transform_1, window_bounds = array<i64: 64, 128>}, {pipeline_mode = #tpu.pipeline_mode<synchronous>, transform_indices = @transform_2, window_bounds = array<i64: 128, 128>}, {pipeline_mode = #tpu.pipeline_mode<synchronous>, transform_indices = @transform_3, window_bounds = array<i64: 128, 128>}, {pipeline_mode = #tpu.pipeline_mode<synchronous>, transform_indices = @transform_4, window_bounds = array<i64: 1, 128>}, {transform_indices = @transform_5, window_bounds = array<i64: 64, 128>}]} {
    %c0 = arith.constant 0 : index
    %c0_0 = arith.constant 0 : index
    %0 = vector.load %arg2[%c0, %c0_0] : memref<64x128xbf16, #tpu.memory_space<vmem>>, vector<64x128xbf16>
    %c0_1 = arith.constant 0 : index
    %c0_2 = arith.constant 0 : index
    %1 = vector.load %arg1[%c0_1, %c0_2] : memref<128x128xbf16, #tpu.memory_space<vmem>>, vector<128x128xbf16>
    %cst = arith.constant dense<0.000000e+00> : vector<64x128xf32>
    %2 = tpu.matmul %0, %1, %cst {dimension_numbers = #tpu.dot_dimension_numbers<[1], [0], [0], [1], [0, 0, 1, 1], [], []>} : vector<64x128xbf16>, vector<128x128xbf16>, vector<64x128xf32> -> vector<64x128xf32>
    %c64_i32 = arith.constant 64 : i32
    %3 = arith.muli %arg0, %c64_i32 : i32
    %4 = tpu.assume_multiple %3, 64 : i32
    %5 = arith.index_cast %4 : i32 to index
    %c0_3 = arith.constant 0 : index
    %6 = vector.load %arg1[%5, %c0_3] : memref<128x128xbf16, #tpu.memory_space<vmem>>, vector<64x128xbf16>
    %7 = arith.truncf %2 : vector<64x128xf32> to vector<64x128xbf16>
    %c0_4 = arith.constant 0 : index
    %c0_5 = arith.constant 0 : index
    %8 = vector.load %arg3[%c0_4, %c0_5] : memref<128x128xbf16, #tpu.memory_space<vmem>>, vector<128x128xbf16>
    %cst_6 = arith.constant dense<0.000000e+00> : vector<64x128xf32>
    %9 = tpu.matmul %7, %8, %cst_6 {dimension_numbers = #tpu.dot_dimension_numbers<[1], [0], [0], [1], [0, 0, 1, 1], [], []>} : vector<64x128xbf16>, vector<128x128xbf16>, vector<64x128xf32> -> vector<64x128xf32>
    %c0_7 = arith.constant 0 : index
    %c0_8 = arith.constant 0 : index
    %10 = vector.load %arg4[%c0_7, %c0_8] : memref<128x128xbf16, #tpu.memory_space<vmem>>, vector<128x128xbf16>
    %cst_9 = arith.constant dense<0.000000e+00> : vector<64x128xf32>
    %11 = tpu.matmul %6, %10, %cst_9 {dimension_numbers = #tpu.dot_dimension_numbers<[1], [0], [0], [1], [0, 0, 1, 1], [], []>} : vector<64x128xbf16>, vector<128x128xbf16>, vector<64x128xf32> -> vector<64x128xf32>
    %12 = arith.addf %9, %11 : vector<64x128xf32>
    %c0_10 = arith.constant 0 : index
    %c0_11 = arith.constant 0 : index
    %13 = vector.load %arg5[%c0_10, %c0_11] : memref<1x128xf32, #tpu.memory_space<vmem>>, vector<1x128xf32>
    %14 = vector.broadcast %13 : vector<1x128xf32> to vector<64x128xf32>
    %15 = arith.addf %12, %14 : vector<64x128xf32>
    %cst_12 = arith.constant 0.000000e+00 : f32
    %16 = vector.broadcast %cst_12 : f32 to vector<64x128xf32>
    %17 = arith.maximumf %15, %16 : vector<64x128xf32>
    %18 = arith.truncf %17 : vector<64x128xf32> to vector<64x128xbf16>
    %c0_13 = arith.constant 0 : index
    %c0_14 = arith.constant 0 : index
    %19 = vector.load %arg6[%c0_13, %c0_14] : memref<64x128xbf16, #tpu.memory_space<vmem>>, vector<64x128xbf16>
    tpu.vector_store %arg6[%c0_13, %c0_14], %18 {strides = array<i32>} : memref<64x128xbf16, #tpu.memory_space<vmem>>, vector<64x128xbf16>,
    return
  }
  func.func @transform_0(%arg0: i32) -> (i32, i32) {
    %c0_i32 = arith.constant 0 : i32
    %c0_i32_0 = arith.constant 0 : i32
    %c0_i32_1 = arith.constant 0 : i32
    return %c0_i32, %c0_i32_0 : i32, i32
  }
  func.func @transform_1(%arg0: i32) -> (i32, i32) {
    %c0_i32 = arith.constant 0 : i32
    %c0_i32_0 = arith.constant 0 : i32
    return %arg0, %c0_i32 : i32, i32
  }
  func.func @transform_2(%arg0: i32) -> (i32, i32) {
    %c0_i32 = arith.constant 0 : i32
    %c0_i32_0 = arith.constant 0 : i32
    %c0_i32_1 = arith.constant 0 : i32
    return %c0_i32, %c0_i32_0 : i32, i32
  }
  func.func @transform_3(%arg0: i32) -> (i32, i32) {
    %c0_i32 = arith.constant 0 : i32
    %c0_i32_0 = arith.constant 0 : i32
    %c0_i32_1 = arith.constant 0 : i32
    return %c0_i32, %c0_i32_0 : i32, i32
  }
  func.func @transform_4(%arg0: i32) -> (i32, i32) {
    %c0_i32 = arith.constant 0 : i32
    %c0_i32_0 = arith.constant 0 : i32
    %c0_i32_1 = arith.constant 0 : i32
    return %c0_i32, %c0_i32_0 : i32, i32
  }
  func.func @transform_5(%arg0: i32) -> (i32, i32) {
    %c0_i32 = arith.constant 0 : i32
    %c0_i32_0 = arith.constant 0 : i32
    return %arg0, %c0_i32 : i32, i32
  }
}

</mosaic_0001>

<llo_original>
// kernel: tpu_custom_call.1
$region0: #{tpu_custom_call.1}
  #allocation0 [shape = 'u32[]', space=smem, size = 0x4, offset = 0x4, fixed_abs, tag = 'smem constant byte address 0x4 - core index']
  #allocation1 [shape = 'u32[144,128]{1,0:T(1,128)}', space=vmem, size = 0x12000, scoped, tag = 'internal scratch']
  %s0 = inlined_call_operand.hbm [shape: bf16[128,128], index: 0, kind: input, shape index: {}]
  %s1 = inlined_call_operand.hbm [shape: bf16[128,128], index: 1, kind: input, shape index: {}]
  %s2 = inlined_call_operand.hbm [shape: bf16[128,128], index: 2, kind: input, shape index: {}]
  %s3 = inlined_call_operand.hbm [shape: bf16[128,128], index: 3, kind: input, shape index: {}]
  %s4 = inlined_call_operand.vmem [shape: f32[1,128], index: 4, kind: input, shape index: {}]
  %s5 = inlined_call_operand.hbm [shape: bf16[128,128], index: 5, kind: output, shape index: {}]
  %s6 = sld [smem:[#allocation0]]
  $region69: #{tpu_custom_call.1} parent=0
    _
  %s8 = ssub.s32 1, %s6
  %s9 = scalar_select 0, %s8, %s6
  $region1: #{tpu_custom_call.1} parent=0
    #allocation2 [shape = 'u8[32768]{0}', space=vmem, size = 0x8000, scoped, tag = 'input window, operand 0, single buffered']
    #allocation3 [shape = 's32[2]{0}', space=sflag, size = 0x8, scoped, tag = 'scoped memory for tpu_custom_call.1']
    #allocation4 [shape = 's32[2]{0}', space=sflag, size = 0x8, scoped, tag = 'scoped memory for tpu_custom_call.1']
    #allocation5 [shape = 'u8[32768]{0}', space=vmem, size = 0x8000, scoped, tag = 'input window, operand 1']
    #allocation6 [shape = 's32[2]{0}', space=sflag, size = 0x8, scoped, tag = 'scoped memory for tpu_custom_call.1']
    #allocation7 [shape = 'u8[32768]{0}', space=vmem, size = 0x8000, scoped, tag = 'input window, operand 2, single buffered']
    #allocation8 [shape = 'u8[32768]{0}', space=vmem, size = 0x8000, scoped, tag = 'input window, operand 3, single buffered']
    #allocation9 [shape = 's32[1]{0}', space=sflag, size = 0x4, scoped, tag = 'scoped memory for tpu_custom_call.1']
    #allocation10 [shape = 'u8[32768]{0}', space=vmem, size = 0x8000, scoped, tag = 'output window, operand 0']
    %10 = vsyncpa [#allocation3], 0
    %11 = vsyncpa [#allocation6], 0
    %s12 = scalar_lea.sflag [#allocation6], 1
    %13 = vsyncpa %s12, 0
    %14 = vsyncpa [#allocation9], 0
    %15 = vsyncpa [#allocation4], 0
    %s16 = scalar_lea.sflag [#allocation4], 1
    %17 = vsyncpa %s16, 0
    loop: start=0, step=1, limit=4
    $region2: #{tpu_custom_call.1} parent=1 // loop_pre_header
      _
    $region3: #{tpu_custom_call.1} parent=1 // loop_header
      %s19 = sphi 0, %s23
      %p20 = scmp.ge.s32.totalorder %s19, 4
      %s27 = sphi 0, %s27
      %s29 = sphi 0, %s27
      %s30 = sphi 0, %s29
      %s44 = sphi 0, %s30
      %s50 = sphi 0, %s52
      %s53 = sphi 0, %s50
      %s54 = sphi 0, %s53
      %s70 = sphi 0, %s54
      %s74 = sphi 0, %s74
      %s76 = sphi 0, %s74
      %s77 = sphi 0, %s76
      %s91 = sphi 0, %s77
      %s95 = sphi 0, %s95
      %s97 = sphi 0, %s95
      %s98 = sphi 0, %s97
      %s112 = sphi 0, %s98
      %s116 = sphi 0, %s116
      %s118 = sphi 0, %s116
      %s119 = sphi 0, %s118
      %s133 = sphi 0, %s119
      %s139 = sphi 0, %s141
      %s142 = sphi 0, %s139
      %s143 = sphi 0, %s142
      %s159 = sphi 0, %s143
    $region4: #{tpu_custom_call.1} parent=1 // loop_header_branch
      %22 = sbr.rel (%p20) target = $region8
    $region5: #{tpu_custom_call.1} parent=1 // loop_body
      %s24 = ssub.s32 %s19, 1
      %s25 = ssub.s32 %s19, 2
      %s26 = sadd.s32 %s19, 1
      %s28 = sadd.s32 %s27, 1
      %p31 = scmp.eq.s32.totalorder %s19, 1
      %p32 = scmp.ne.s32.totalorder %s27, %s29
      %p33 = scmp.eq.s32.totalorder %s19, 0
      %p34 = por %p32, %p33
      %p35 = scmp.ne.s32.totalorder %s27, %s29
      %p36 = scmp.eq.s32.totalorder %s24, 1
      %p37 = por %p35, %p36
      %p38 = scmp.ne.s32.totalorder %s29, %s30
      %p39 = scmp.eq.s32.totalorder %s24, 0
      %p40 = por %p38, %p39
      %p41 = scmp.ne.s32.totalorder %s29, %s30
      %p42 = scmp.eq.s32.totalorder %s25, 1
      %p43 = por %p41, %p42
      %p45 = scmp.ne.s32.totalorder %s30, %s44
      %p46 = scmp.eq.s32.totalorder %s25, 0
      %p47 = por %p45, %p46
      %s48 = ssub.s32 %s19, %s26
      %p49 = scmp.eq.s32.totalorder %s48, 0
      %s51 = sadd.s32 %s50, 1
      %s52 = scalar_select %p49, %s50, %s51
      %p55 = pneg %p49
      %p56 = scmp.eq.s32.totalorder %s19, 1
      %p57 = por %p55, %p56
      %p58 = scmp.ne.s32.totalorder %s50, %s53
      %p59 = scmp.eq.s32.totalorder %s19, 0
      %p60 = por %p58, %p59
      %p61 = scmp.ne.s32.totalorder %s50, %s53
      %p62 = scmp.eq.s32.totalorder %s24, 1
      %p63 = por %p61, %p62
      %p64 = scmp.ne.s32.totalorder %s53, %s54
      %p65 = scmp.eq.s32.totalorder %s24, 0
      %p66 = por %p64, %p65
      %p67 = scmp.ne.s32.totalorder %s53, %s54
      %p68 = scmp.eq.s32.totalorder %s25, 1
      %p69 = por %p67, %p68
      %p71 = scmp.ne.s32.totalorder %s54, %s70
      %p72 = scmp.eq.s32.totalorder %s25, 0
      %p73 = por %p71, %p72
      %s75 = sadd.s32 %s74, 1
      %p78 = scmp.eq.s32.totalorder %s19, 1
      %p79 = scmp.ne.s32.totalorder %s74, %s76
      %p80 = scmp.eq.s32.totalorder %s19, 0
      %p81 = por %p79, %p80
      %p82 = scmp.ne.s32.totalorder %s74, %s76
      %p83 = scmp.eq.s32.totalorder %s24, 1
      %p84 = por %p82, %p83
      %p85 = scmp.ne.s32.totalorder %s76, %s77
      %p86 = scmp.eq.s32.totalorder %s24, 0
      %p87 = por %p85, %p86
      %p88 = scmp.ne.s32.totalorder %s76, %s77
      %p89 = scmp.eq.s32.totalorder %s25, 1
      %p90 = por %p88, %p89
      %p92 = scmp.ne.s32.totalorder %s77, %s91
      %p93 = scmp.eq.s32.totalorder %s25, 0
      %p94 = por %p92, %p93
      %s96 = sadd.s32 %s95, 1
      %p99 = scmp.eq.s32.totalorder %s19, 1
      %p100 = scmp.ne.s32.totalorder %s95, %s97
      %p101 = scmp.eq.s32.totalorder %s19, 0
      %p102 = por %p100, %p101
      %p103 = scmp.ne.s32.totalorder %s95, %s97
      %p104 = scmp.eq.s32.totalorder %s24, 1
      %p105 = por %p103, %p104
      %p106 = scmp.ne.s32.totalorder %s97, %s98
      %p107 = scmp.eq.s32.totalorder %s24, 0
      %p108 = por %p106, %p107
      %p109 = scmp.ne.s32.totalorder %s97, %s98
      %p110 = scmp.eq.s32.totalorder %s25, 1
      %p111 = por %p109, %p110
      %p113 = scmp.ne.s32.totalorder %s98, %s112
      %p114 = scmp.eq.s32.totalorder %s25, 0
      %p115 = por %p113, %p114
      %s117 = sadd.s32 %s116, 1
      %p120 = scmp.eq.s32.totalorder %s19, 1
      %p121 = scmp.ne.s32.totalorder %s116, %s118
      %p122 = scmp.eq.s32.totalorder %s19, 0
      %p123 = por %p121, %p122
      %p124 = scmp.ne.s32.totalorder %s116, %s118
      %p125 = scmp.eq.s32.totalorder %s24, 1
      %p126 = por %p124, %p125
      %p127 = scmp.ne.s32.totalorder %s118, %s119
      %p128 = scmp.eq.s32.totalorder %s24, 0
      %p129 = por %p127, %p128
      %p130 = scmp.ne.s32.totalorder %s118, %s119
      %p131 = scmp.eq.s32.totalorder %s25, 1
      %p132 = por %p130, %p131
      %p134 = scmp.ne.s32.totalorder %s119, %s133
      %p135 = scmp.eq.s32.totalorder %s25, 0
      %p136 = por %p134, %p135
      %s137 = ssub.s32 %s19, %s26
      %p138 = scmp.eq.s32.totalorder %s137, 0
      %s140 = sadd.s32 %s139, 1
      %s141 = scalar_select %p138, %s139, %s140
      %p144 = pneg %p138
      %p145 = scmp.eq.s32.totalorder %s19, 1
      %p146 = por %p144, %p145
      %p147 = scmp.ne.s32.totalorder %s139, %s142
      %p148 = scmp.eq.s32.totalorder %s19, 0
      %p149 = por %p147, %p148
      %p150 = scmp.ne.s32.totalorder %s139, %s142
      %p151 = scmp.eq.s32.totalorder %s24, 1
      %p152 = por %p150, %p151
      %p153 = scmp.ne.s32.totalorder %s142, %s143
      %p154 = scmp.eq.s32.totalorder %s24, 0
      %p155 = por %p153, %p154
      %p156 = scmp.ne.s32.totalorder %s142, %s143
      %p157 = scmp.eq.s32.totalorder %s25, 1
      %p158 = por %p156, %p157
      %p160 = scmp.ne.s32.totalorder %s143, %s159
      %p161 = scmp.eq.s32.totalorder %s25, 0
      %p162 = por %p160, %p161
      %p163 = scmp.le.s32.totalorder 1, %s19
      %p164 = scmp.lt.s32.totalorder %s19, 3
      %p165 = pnand %p163, %p164
      %p166 = pneg %p165
      // Predicated region
      $region9: #{tpu_custom_call.1} parent=5 // pred_check
        _
      $region10: #{tpu_custom_call.1} parent=5 // pred_check_branch
        %168 = sbr.rel (%p165) target = $region12
      $region11: #{tpu_custom_call.1} parent=5 // pred_region
        %s169 = ssub.s32 %s19, 1
        // Predicated region
        $region13: #{tpu_custom_call.1} parent=11 // pred_check
          %p170 = pneg %p40
        $region14: #{tpu_custom_call.1} parent=11 // pred_check_branch
          %172 = sbr.rel (%p170) target = $region16
        $region15: #{tpu_custom_call.1} parent=11 // pred_region
          %s174 = ssub.s32 1024, 1024
          %175 = vsyncadd [#allocation3], %s174
          %s176 = sshll.u32 [#allocation2], 4
          %s177 = int_to_ptr.vmem [resolvable:$true] %s176
          %182 = dma.hbm_to_vmem [thread:$0]  %s0, 1024, %s177, [#allocation3], 64, 64, 4
        $region16: #{tpu_custom_call.1} parent=11 // pred_fallthru
          _
        // Predicated region
        $region17: #{tpu_custom_call.1} parent=11 // pred_check
          %p183 = pneg %p87
        $region18: #{tpu_custom_call.1} parent=11 // pred_check_branch
          %185 = sbr.rel (%p183) target = $region20
        $region19: #{tpu_custom_call.1} parent=11 // pred_region
          %s187 = ssub.s32 1024, 1024
          %188 = vsyncadd [#allocation6], %s187
          %s189 = sshll.u32 [#allocation7], 4
          %s190 = int_to_ptr.vmem [resolvable:$true] %s189
          %195 = dma.hbm_to_vmem [thread:$0]  %s2, 1024, %s190, [#allocation6], 64, 64, 4
        $region20: #{tpu_custom_call.1} parent=11 // pred_fallthru
          _
        // Predicated region
        $region21: #{tpu_custom_call.1} parent=11 // pred_check
          %p196 = pneg %p108
        $region22: #{tpu_custom_call.1} parent=11 // pred_check_branch
          %198 = sbr.rel (%p196) target = $region24
        $region23: #{tpu_custom_call.1} parent=11 // pred_region
          %s200 = ssub.s32 1024, 1024
          %201 = vsyncadd [#allocation9], %s200
          %s202 = sshll.u32 [#allocation8], 4
          %s203 = int_to_ptr.vmem [resolvable:$true] %s202
          %208 = dma.hbm_to_vmem [thread:$0]  %s3, 1024, %s203, [#allocation9], 64, 64, 4
        $region24: #{tpu_custom_call.1} parent=11 // pred_fallthru
          _
        // Predicated region
        $region25: #{tpu_custom_call.1} parent=11 // pred_check
          %p209 = pneg %p129
        $region26: #{tpu_custom_call.1} parent=11 // pred_check_branch
          %211 = sbr.rel (%p209) target = $region28
        $region27: #{tpu_custom_call.1} parent=11 // pred_region
          _
        $region28: #{tpu_custom_call.1} parent=11 // pred_fallthru
          _
      $region12: #{tpu_custom_call.1} parent=5 // pred_fallthru
        _
      %p212 = scmp.lt.s32.totalorder %s19, 2
      // Predicated region
      $region29: #{tpu_custom_call.1} parent=5 // pred_check
        %p213 = pneg %p212
      $region30: #{tpu_custom_call.1} parent=5 // pred_check_branch
        %215 = sbr.rel (%p213) target = $region32
      $region31: #{tpu_custom_call.1} parent=5 // pred_region
        // Predicated region
        $region33: #{tpu_custom_call.1} parent=31 // pred_check
          %p216 = pneg %p60
        $region34: #{tpu_custom_call.1} parent=31 // pred_check_branch
          %218 = sbr.rel (%p216) target = $region36
        $region35: #{tpu_custom_call.1} parent=31 // pred_region
          %s219 = sand.u32 %s19, 1
          %s220 = scalar_lea.sflag [#allocation6], %s219
          %s221 = sand.u32 %s50, 1
          %s222 = smul.addr %s221, 32
          %s223 = scalar_lea.vmem [#allocation5], %s222
          %s224 = smul.u32 8, %s19
          %s226 = ssub.s32 512, 512
          %227 = vsyncadd %s220, %s226
          %s228 = smul.addr %s224, 64
          %s229 = scalar_lea.hbm %s1, %s228
          %s230 = sshll.u32 %s223, 4
          %s231 = int_to_ptr.vmem [resolvable:$true] %s230
          %236 = dma.hbm_to_vmem [thread:$0]  %s229, 512, %s231, %s220, 64, 64, 4
        $region36: #{tpu_custom_call.1} parent=31 // pred_fallthru
          _
      $region32: #{tpu_custom_call.1} parent=5 // pred_fallthru
        _
      %p237 = scmp.le.s32.totalorder 1, %s19
      %p238 = scmp.lt.s32.totalorder %s19, 3
      %p239 = pnand %p237, %p238
      %p240 = pneg %p239
      // Predicated region
      $region37: #{tpu_custom_call.1} parent=5 // pred_check
        _
      $region38: #{tpu_custom_call.1} parent=5 // pred_check_branch
        %242 = sbr.rel (%p239) target = $region40
      $region39: #{tpu_custom_call.1} parent=5 // pred_region
        %s243 = ssub.s32 %s19, 1
        // Predicated region
        $region41: #{tpu_custom_call.1} parent=39 // pred_check
          %p244 = pneg %p40
        $region42: #{tpu_custom_call.1} parent=39 // pred_check_branch
          %246 = sbr.rel (%p244) target = $region44
        $region43: #{tpu_custom_call.1} parent=39 // pred_region
          %247 = dma.done [#allocation3], 1024
        $region44: #{tpu_custom_call.1} parent=39 // pred_fallthru
          _
        %s248 = sand.u32 %s24, 1
        %s249 = scalar_lea.sflag [#allocation6], %s248
        %s250 = sand.u32 %s53, 1
        %s251 = smul.addr %s250, 32
        %s252 = scalar_lea.vmem [#allocation5], %s251
        // Predicated region
        $region45: #{tpu_custom_call.1} parent=39 // pred_check
          %p253 = pneg %p66
        $region46: #{tpu_custom_call.1} parent=39 // pred_check_branch
          %255 = sbr.rel (%p253) target = $region48
        $region47: #{tpu_custom_call.1} parent=39 // pred_region
          %256 = dma.done %s249, 512
        $region48: #{tpu_custom_call.1} parent=39 // pred_fallthru
          _
        // Predicated region
        $region49: #{tpu_custom_call.1} parent=39 // pred_check
          %p257 = pneg %p87
        $region50: #{tpu_custom_call.1} parent=39 // pred_check_branch
          %259 = sbr.rel (%p257) target = $region52
        $region51: #{tpu_custom_call.1} parent=39 // pred_region
          %260 = dma.done [#allocation6], 1024
        $region52: #{tpu_custom_call.1} parent=39 // pred_fallthru
          _
        // Predicated region
        $region53: #{tpu_custom_call.1} parent=39 // pred_check
          %p261 = pneg %p108
        $region54: #{tpu_custom_call.1} parent=39 // pred_check_branch
          %263 = sbr.rel (%p261) target = $region56
        $region55: #{tpu_custom_call.1} parent=39 // pred_region
          %264 = dma.done [#allocation9], 1024
        $region56: #{tpu_custom_call.1} parent=39 // pred_fallthru
          _
        %p265 = pneg %p40
        %p266 = pneg %p37
        %s267 = sand.u32 %s24, 1
        %s268 = scalar_lea.sflag [#allocation6], %s267
        %s269 = sand.u32 %s53, 1
        %s270 = smul.addr %s269, 32
        %s271 = scalar_lea.vmem [#allocation5], %s270
        %p272 = pneg %p66
        %p273 = pneg %p63
        %p274 = pneg %p87
        %p275 = pneg %p84
        %p276 = pneg %p108
        %p277 = pneg %p105
        %p278 = pneg %p129
        %p279 = pneg %p126
        %p280 = pneg %p155
        %p281 = pneg %p152
        %s282 = sand.u32 %s142, 1
        %s283 = scalar_lea.sflag [#allocation4], %s282
        %s284 = sand.u32 %s142, 1
        %s285 = smul.addr %s284, 32
        %s286 = scalar_lea.vmem [#allocation10], %s285
        %s287 = smul.u32 8, %s24
        %s288 = smul.u32 8, %s24
        %v290 = vld [vmem:[%s252] sm:$0xf]
        %v291 = vld [vmem:[%s252 + $0x4] sm:$0xf]
        %v292 = vld [vmem:[%s252 + $0x8] sm:$0xf]
        %v293 = vld [vmem:[%s252 + $0xc] sm:$0xf]
        %v294 = vld [vmem:[%s252 + $0x10] sm:$0xf]
        %v295 = vld [vmem:[%s252 + $0x14] sm:$0xf]
        %v296 = vld [vmem:[%s252 + $0x18] sm:$0xf]
        %v297 = vld [vmem:[%s252 + $0x1c] sm:$0xf]
        %v298 = vld [vmem:[#allocation2] sm:$0xf]
        %v299 = vld [vmem:[#allocation2 + $0x4] sm:$0xf]
        %v300 = vld [vmem:[#allocation2 + $0x8] sm:$0xf]
        %v301 = vld [vmem:[#allocation2 + $0xc] sm:$0xf]
        %v302 = vld [vmem:[#allocation2 + $0x10] sm:$0xf]
        %v303 = vld [vmem:[#allocation2 + $0x14] sm:$0xf]
        %v304 = vld [vmem:[#allocation2 + $0x18] sm:$0xf]
        %v305 = vld [vmem:[#allocation2 + $0x1c] sm:$0xf]
        %v306 = vld [vmem:[#allocation2 + $0x20] sm:$0xf]
        %v307 = vld [vmem:[#allocation2 + $0x24] sm:$0xf]
        %v308 = vld [vmem:[#allocation2 + $0x28] sm:$0xf]
        %v309 = vld [vmem:[#allocation2 + $0x2c] sm:$0xf]
        %v310 = vld [vmem:[#allocation2 + $0x30] sm:$0xf]
        %v311 = vld [vmem:[#allocation2 + $0x34] sm:$0xf]
        %v312 = vld [vmem:[#allocation2 + $0x38] sm:$0xf]
        %v313 = vld [vmem:[#allocation2 + $0x3c] sm:$0xf]
        %v322 = vunpack.c.l.b16 %v290
        %v323 = vunpack.c.l.b16 %v291
        %v324 = vunpack.c.l.b16 %v292
        %v325 = vunpack.c.l.b16 %v293
        %v326 = vunpack.c.l.b16 %v294
        %v327 = vunpack.c.l.b16 %v295
        %v328 = vunpack.c.l.b16 %v296
        %v329 = vunpack.c.l.b16 %v297
        %v330 = vpack.c.b16 %v323, %v322
        %v331 = vpack.c.b16 %v325, %v324
        %v332 = vpack.c.b16 %v327, %v326
        %v333 = vpack.c.b16 %v329, %v328
        %v354 = vunpack.c.l.b16 %v298
        %v355 = vunpack.c.l.b16 %v299
        %v356 = vunpack.c.l.b16 %v300
        %v357 = vunpack.c.l.b16 %v301
        %v358 = vunpack.c.l.b16 %v302
        %v359 = vunpack.c.l.b16 %v303
        %v360 = vunpack.c.l.b16 %v304
        %v361 = vunpack.c.l.b16 %v305
        %v362 = vunpack.c.l.b16 %v306
        %v363 = vunpack.c.l.b16 %v307
        %v364 = vunpack.c.l.b16 %v308
        %v365 = vunpack.c.l.b16 %v309
        %v366 = vunpack.c.l.b16 %v310
        %v367 = vunpack.c.l.b16 %v311
        %v368 = vunpack.c.l.b16 %v312
        %v369 = vunpack.c.l.b16 %v313
        %v370 = vpack.c.b16 %v355, %v354
        %v371 = vpack.c.b16 %v357, %v356
        %v372 = vpack.c.b16 %v359, %v358
        %v373 = vpack.c.b16 %v361, %v360
        %v374 = vpack.c.b16 %v363, %v362
        %v375 = vpack.c.b16 %v365, %v364
        %v376 = vpack.c.b16 %v367, %v366
        %v377 = vpack.c.b16 %v369, %v368
        %386 = vmatprep.subr.bf16.mxu0 0
        %387 = vmatpush1.bf16.msra.mxu0 %v377
        %388 = vmatprep.subr.bf16.mxu0 0
        %389 = vmatpush1.bf16.msra.mxu0 %v376
        %390 = vmatprep.subr.bf16.mxu0 0
        %391 = vmatpush1.bf16.msra.mxu0 %v375
        %392 = vmatprep.subr.bf16.mxu0 0
        %393 = vmatpush1.bf16.msra.mxu0 %v374
        %394 = vmatprep.subr.bf16.mxu0 0
        %395 = vmatpush1.bf16.msra.mxu0 %v373
        %396 = vmatprep.subr.bf16.mxu0 0
        %397 = vmatpush1.bf16.msra.mxu0 %v372
        %398 = vmatprep.subr.bf16.mxu0 0
        %399 = vmatpush1.bf16.msra.mxu0 %v371
        %400 = vmatprep.subr.bf16.mxu0 0
        %401 = vmatpush1.bf16.msra.mxu0 %v370
        %402 = vmatprep.subr.bf16.mxu0 0
        %403 = vmatpush2.bf16.msra.mxu0 0
        %404 = vmatprep.subr.bf16.mxu0 0
        %405 = vmatpush2.bf16.msra.mxu0 0
        %406 = vmatprep.subr.bf16.mxu0 0
        %407 = vmatpush2.bf16.msra.mxu0 0
        %408 = vmatprep.subr.bf16.mxu0 0
        %409 = vmatpush2.bf16.msra.mxu0 0
        %410 = vmatprep.subr.bf16.mxu0 0
        %411 = vmatpush2.bf16.msra.mxu0 0
        %412 = vmatprep.subr.bf16.mxu0 0
        %413 = vmatpush2.bf16.msra.mxu0 0
        %414 = vmatprep.subr.bf16.mxu0 0
        %415 = vmatpush2.bf16.msra.mxu0 0
        %416 = vmatprep.subr.bf16.mxu0 0
        %417 = vmatpush2.bf16.msra.mxu0 0
        %418 = vmatprep.mubr.bf16.mxu0 0
        %419 = vmatmul.mubr.bf16.gmra.mxu0 %v330
        %v420 = vpop.f32.mrf.mxu0
        %v421 = vadd.f32 0.0, %v420
        %v422 = vpop.f32.mrf.mxu0
        %v423 = vpop.f32.mrf.mxu0
        %v424 = vadd.f32 0.0, %v423
        %v425 = vpop.f32.mrf.mxu0
        %426 = vmatprep.mubr.bf16.mxu0 0
        %427 = vmatmul.mubr.bf16.gmra.mxu0 %v331
        %v428 = vpop.f32.mrf.mxu0
        %v429 = vadd.f32 0.0, %v428
        %v430 = vpop.f32.mrf.mxu0
        %v431 = vpop.f32.mrf.mxu0
        %v432 = vadd.f32 0.0, %v431
        %v433 = vpop.f32.mrf.mxu0
        %434 = vmatprep.mubr.bf16.mxu0 0
        %435 = vmatmul.mubr.bf16.gmra.mxu0 %v332
        %v436 = vpop.f32.mrf.mxu0
        %v437 = vadd.f32 0.0, %v436
        %v438 = vpop.f32.mrf.mxu0
        %v439 = vpop.f32.mrf.mxu0
        %v440 = vadd.f32 0.0, %v439
        %v441 = vpop.f32.mrf.mxu0
        %442 = vmatprep.mubr.bf16.mxu0 0
        %443 = vmatmul.mubr.bf16.gmra.mxu0 %v333
        %v444 = vpop.f32.mrf.mxu0
        %v445 = vadd.f32 0.0, %v444
        %v446 = vpop.f32.mrf.mxu0
        %v447 = vpop.f32.mrf.mxu0
        %v448 = vadd.f32 0.0, %v447
        %v449 = vpop.f32.mrf.mxu0
        %450 = vdwg.mxu0
        %s451 = smul.u32 %s24, 64
        %s452 = sshra.s32 %s451, 3
        %s453 = sand.u32 %s451, 7
        %s454 = smul.addr %s452, 4
        %s455 = scalar_lea.vmem [#allocation2], %s454
        %v456 = vld [vmem:[%s455] sm:$0xf]
        %v457 = vld [vmem:[%s455 + $0x4] sm:$0xf]
        %v458 = vld [vmem:[%s455 + $0x8] sm:$0xf]
        %v459 = vld [vmem:[%s455 + $0xc] sm:$0xf]
        %v460 = vld [vmem:[%s455 + $0x10] sm:$0xf]
        %v461 = vld [vmem:[%s455 + $0x14] sm:$0xf]
        %v462 = vld [vmem:[%s455 + $0x18] sm:$0xf]
        %v463 = vld [vmem:[%s455 + $0x1c] sm:$0xf]
        %v464 = vpack.c.bf16 %v424, %v421
        %v465 = vpack.c.bf16 %v432, %v429
        %v466 = vpack.c.bf16 %v440, %v437
        %v467 = vpack.c.bf16 %v448, %v445
        %v468 = vld [vmem:[#allocation7] sm:$0xf]
        %v469 = vld [vmem:[#allocation7 + $0x4] sm:$0xf]
        %v470 = vld [vmem:[#allocation7 + $0x8] sm:$0xf]
        %v471 = vld [vmem:[#allocation7 + $0xc] sm:$0xf]
        %v472 = vld [vmem:[#allocation7 + $0x10] sm:$0xf]
        %v473 = vld [vmem:[#allocation7 + $0x14] sm:$0xf]
        %v474 = vld [vmem:[#allocation7 + $0x18] sm:$0xf]
        %v475 = vld [vmem:[#allocation7 + $0x1c] sm:$0xf]
        %v476 = vld [vmem:[#allocation7 + $0x20] sm:$0xf]
        %v477 = vld [vmem:[#allocation7 + $0x24] sm:$0xf]
        %v478 = vld [vmem:[#allocation7 + $0x28] sm:$0xf]
        %v479 = vld [vmem:[#allocation7 + $0x2c] sm:$0xf]
        %v480 = vld [vmem:[#allocation7 + $0x30] sm:$0xf]
        %v481 = vld [vmem:[#allocation7 + $0x34] sm:$0xf]
        %v482 = vld [vmem:[#allocation7 + $0x38] sm:$0xf]
        %v483 = vld [vmem:[#allocation7 + $0x3c] sm:$0xf]
        %v484 = vld [vmem:[#allocation8] sm:$0xf]
        %v485 = vld [vmem:[#allocation8 + $0x4] sm:$0xf]
        %v486 = vld [vmem:[#allocation8 + $0x8] sm:$0xf]
        %v487 = vld [vmem:[#allocation8 + $0xc] sm:$0xf]
        %v488 = vld [vmem:[#allocation8 + $0x10] sm:$0xf]
        %v489 = vld [vmem:[#allocation8 + $0x14] sm:$0xf]
        %v490 = vld [vmem:[#allocation8 + $0x18] sm:$0xf]
        %v491 = vld [vmem:[#allocation8 + $0x1c] sm:$0xf]
        %v492 = vld [vmem:[#allocation8 + $0x20] sm:$0xf]
        %v493 = vld [vmem:[#allocation8 + $0x24] sm:$0xf]
        %v494 = vld [vmem:[#allocation8 + $0x28] sm:$0xf]
        %v495 = vld [vmem:[#allocation8 + $0x2c] sm:$0xf]
        %v496 = vld [vmem:[#allocation8 + $0x30] sm:$0xf]
        %v497 = vld [vmem:[#allocation8 + $0x34] sm:$0xf]
        %v498 = vld [vmem:[#allocation8 + $0x38] sm:$0xf]
        %v499 = vld [vmem:[#allocation8 + $0x3c] sm:$0xf]
        %v508 = vunpack.c.l.b16 %v456
        %v509 = vunpack.c.l.b16 %v457
        %v510 = vunpack.c.l.b16 %v458
        %v511 = vunpack.c.l.b16 %v459
        %v512 = vunpack.c.l.b16 %v460
        %v513 = vunpack.c.l.b16 %v461
        %v514 = vunpack.c.l.b16 %v462
        %v515 = vunpack.c.l.b16 %v463
        %v516 = vpack.c.b16 %v509, %v508
        %v517 = vpack.c.b16 %v511, %v510
        %v518 = vpack.c.b16 %v513, %v512
        %v519 = vpack.c.b16 %v515, %v514
        %v540 = vunpack.c.l.b16 %v484
        %v541 = vunpack.c.l.b16 %v485
        %v542 = vunpack.c.l.b16 %v486
        %v543 = vunpack.c.l.b16 %v487
        %v544 = vunpack.c.l.b16 %v488
        %v545 = vunpack.c.l.b16 %v489
        %v546 = vunpack.c.l.b16 %v490
        %v547 = vunpack.c.l.b16 %v491
        %v548 = vunpack.c.l.b16 %v492
        %v549 = vunpack.c.l.b16 %v493
        %v550 = vunpack.c.l.b16 %v494
        %v551 = vunpack.c.l.b16 %v495
        %v552 = vunpack.c.l.b16 %v496
        %v553 = vunpack.c.l.b16 %v497
        %v554 = vunpack.c.l.b16 %v498
        %v555 = vunpack.c.l.b16 %v499
        %v556 = vpack.c.b16 %v541, %v540
        %v557 = vpack.c.b16 %v543, %v542
        %v558 = vpack.c.b16 %v545, %v544
        %v559 = vpack.c.b16 %v547, %v546
        %v560 = vpack.c.b16 %v549, %v548
        %v561 = vpack.c.b16 %v551, %v550
        %v562 = vpack.c.b16 %v553, %v552
        %v563 = vpack.c.b16 %v555, %v554
        %572 = vmatprep.subr.bf16.mxu0 0
        %573 = vmatpush1.bf16.msra.mxu0 %v563
        %574 = vmatprep.subr.bf16.mxu0 0
        %575 = vmatpush1.bf16.msra.mxu0 %v562
        %576 = vmatprep.subr.bf16.mxu0 0
        %577 = vmatpush1.bf16.msra.mxu0 %v561
        %578 = vmatprep.subr.bf16.mxu0 0
        %579 = vmatpush1.bf16.msra.mxu0 %v560
        %580 = vmatprep.subr.bf16.mxu0 0
        %581 = vmatpush1.bf16.msra.mxu0 %v559
        %582 = vmatprep.subr.bf16.mxu0 0
        %583 = vmatpush1.bf16.msra.mxu0 %v558
        %584 = vmatprep.subr.bf16.mxu0 0
        %585 = vmatpush1.bf16.msra.mxu0 %v557
        %586 = vmatprep.subr.bf16.mxu0 0
        %587 = vmatpush1.bf16.msra.mxu0 %v556
        %588 = vmatprep.subr.bf16.mxu0 0
        %589 = vmatpush2.bf16.msra.mxu0 0
        %590 = vmatprep.subr.bf16.mxu0 0
        %591 = vmatpush2.bf16.msra.mxu0 0
        %592 = vmatprep.subr.bf16.mxu0 0
        %593 = vmatpush2.bf16.msra.mxu0 0
        %594 = vmatprep.subr.bf16.mxu0 0
        %595 = vmatpush2.bf16.msra.mxu0 0
        %596 = vmatprep.subr.bf16.mxu0 0
        %597 = vmatpush2.bf16.msra.mxu0 0
        %598 = vmatprep.subr.bf16.mxu0 0
        %599 = vmatpush2.bf16.msra.mxu0 0
        %600 = vmatprep.subr.bf16.mxu0 0
        %601 = vmatpush2.bf16.msra.mxu0 0
        %602 = vmatprep.subr.bf16.mxu0 0
        %603 = vmatpush2.bf16.msra.mxu0 0
        %604 = vmatprep.mubr.bf16.mxu0 0
        %605 = vmatmul.mubr.bf16.gmra.mxu0 %v516
        %v606 = vpop.f32.mrf.mxu0
        %v607 = vadd.f32 0.0, %v606
        %v608 = vpop.f32.mrf.mxu0
        %v609 = vpop.f32.mrf.mxu0
        %v610 = vadd.f32 0.0, %v609
        %v611 = vpop.f32.mrf.mxu0
        %612 = vmatprep.mubr.bf16.mxu0 0
        %613 = vmatmul.mubr.bf16.gmra.mxu0 %v517
        %v614 = vpop.f32.mrf.mxu0
        %v615 = vadd.f32 0.0, %v614
        %v616 = vpop.f32.mrf.mxu0
        %v617 = vpop.f32.mrf.mxu0
        %v618 = vadd.f32 0.0, %v617
        %v619 = vpop.f32.mrf.mxu0
        %620 = vmatprep.mubr.bf16.mxu0 0
        %621 = vmatmul.mubr.bf16.gmra.mxu0 %v518
        %v622 = vpop.f32.mrf.mxu0
        %v623 = vadd.f32 0.0, %v622
        %v624 = vpop.f32.mrf.mxu0
        %v625 = vpop.f32.mrf.mxu0
        %v626 = vadd.f32 0.0, %v625
        %v627 = vpop.f32.mrf.mxu0
        %628 = vmatprep.mubr.bf16.mxu0 0
        %629 = vmatmul.mubr.bf16.gmra.mxu0 %v519
        %v630 = vpop.f32.mrf.mxu0
        %v631 = vadd.f32 0.0, %v630
        %v632 = vpop.f32.mrf.mxu0
        %v633 = vpop.f32.mrf.mxu0
        %v634 = vadd.f32 0.0, %v633
        %v635 = vpop.f32.mrf.mxu0
        %636 = vdwg.mxu0
        %v653 = vunpack.c.l.b16 %v468
        %v654 = vunpack.c.l.b16 %v469
        %v655 = vunpack.c.l.b16 %v470
        %v656 = vunpack.c.l.b16 %v471
        %v657 = vunpack.c.l.b16 %v472
        %v658 = vunpack.c.l.b16 %v473
        %v659 = vunpack.c.l.b16 %v474
        %v660 = vunpack.c.l.b16 %v475
        %v661 = vunpack.c.l.b16 %v476
        %v662 = vunpack.c.l.b16 %v477
        %v663 = vunpack.c.l.b16 %v478
        %v664 = vunpack.c.l.b16 %v479
        %v665 = vunpack.c.l.b16 %v480
        %v666 = vunpack.c.l.b16 %v481
        %v667 = vunpack.c.l.b16 %v482
        %v668 = vunpack.c.l.b16 %v483
        %v669 = vpack.c.b16 %v654, %v653
        %v670 = vpack.c.b16 %v656, %v655
        %v671 = vpack.c.b16 %v658, %v657
        %v672 = vpack.c.b16 %v660, %v659
        %v673 = vpack.c.b16 %v662, %v661
        %v674 = vpack.c.b16 %v664, %v663
        %v675 = vpack.c.b16 %v666, %v665
        %v676 = vpack.c.b16 %v668, %v667
        %685 = vmatprep.subr.bf16.mxu0 0
        %686 = vmatpush1.bf16.msra.mxu0 %v676
        %687 = vmatprep.subr.bf16.mxu0 0
        %688 = vmatpush1.bf16.msra.mxu0 %v675
        %689 = vmatprep.subr.bf16.mxu0 0
        %690 = vmatpush1.bf16.msra.mxu0 %v674
        %691 = vmatprep.subr.bf16.mxu0 0
        %692 = vmatpush1.bf16.msra.mxu0 %v673
        %693 = vmatprep.subr.bf16.mxu0 0
        %694 = vmatpush1.bf16.msra.mxu0 %v672
        %695 = vmatprep.subr.bf16.mxu0 0
        %696 = vmatpush1.bf16.msra.mxu0 %v671
        %697 = vmatprep.subr.bf16.mxu0 0
        %698 = vmatpush1.bf16.msra.mxu0 %v670
        %699 = vmatprep.subr.bf16.mxu0 0
        %700 = vmatpush1.bf16.msra.mxu0 %v669
        %701 = vmatprep.subr.bf16.mxu0 0
        %702 = vmatpush2.bf16.msra.mxu0 0
        %703 = vmatprep.subr.bf16.mxu0 0
        %704 = vmatpush2.bf16.msra.mxu0 0
        %705 = vmatprep.subr.bf16.mxu0 0
        %706 = vmatpush2.bf16.msra.mxu0 0
        %707 = vmatprep.subr.bf16.mxu0 0
        %708 = vmatpush2.bf16.msra.mxu0 0
        %709 = vmatprep.subr.bf16.mxu0 0
        %710 = vmatpush2.bf16.msra.mxu0 0
        %711 = vmatprep.subr.bf16.mxu0 0
        %712 = vmatpush2.bf16.msra.mxu0 0
        %713 = vmatprep.subr.bf16.mxu0 0
        %714 = vmatpush2.bf16.msra.mxu0 0
        %715 = vmatprep.subr.bf16.mxu0 0
        %716 = vmatpush2.bf16.msra.mxu0 0
        %717 = vmatprep.mubr.bf16.mxu0 0
        %718 = vmatmul.mubr.bf16.gmra.mxu0 %v464
        %v719 = vpop.f32.mrf.mxu0
        %v720 = vadd.f32 %v607, %v719
        %v721 = vpop.f32.mrf.mxu0
        %v722 = vpop.f32.mrf.mxu0
        %v723 = vadd.f32 %v610, %v722
        %v724 = vpop.f32.mrf.mxu0
        %725 = vmatprep.mubr.bf16.mxu0 0
        %726 = vmatmul.mubr.bf16.gmra.mxu0 %v465
        %v727 = vpop.f32.mrf.mxu0
        %v728 = vadd.f32 %v615, %v727
        %v729 = vpop.f32.mrf.mxu0
        %v730 = vpop.f32.mrf.mxu0
        %v731 = vadd.f32 %v618, %v730
        %v732 = vpop.f32.mrf.mxu0
        %733 = vmatprep.mubr.bf16.mxu0 0
        %734 = vmatmul.mubr.bf16.gmra.mxu0 %v466
        %v735 = vpop.f32.mrf.mxu0
        %v736 = vadd.f32 %v623, %v735
        %v737 = vpop.f32.mrf.mxu0
        %v738 = vpop.f32.mrf.mxu0
        %v739 = vadd.f32 %v626, %v738
        %v740 = vpop.f32.mrf.mxu0
        %741 = vmatprep.mubr.bf16.mxu0 0
        %742 = vmatmul.mubr.bf16.gmra.mxu0 %v467
        %v743 = vpop.f32.mrf.mxu0
        %v744 = vadd.f32 %v631, %v743
        %v745 = vpop.f32.mrf.mxu0
        %v746 = vpop.f32.mrf.mxu0
        %v747 = vadd.f32 %v634, %v746
        %v748 = vpop.f32.mrf.mxu0
        %749 = vdwg.mxu0
        %v750 = vld [vmem:[%s4] sm:$0x1]
        %v752 = vlaneseq
        %v753 = vshrl.u32 %v752, 7
        %v754 = vsub.s32 0, %v753
        %v755 = vrot.slane %v750, %v754
        %v757 = vadd.f32 %v720, %v755
        %v758 = vadd.f32 %v723, %v755
        %v759 = vadd.f32 %v728, %v755
        %v760 = vadd.f32 %v731, %v755
        %v761 = vadd.f32 %v736, %v755
        %v762 = vadd.f32 %v739, %v755
        %v763 = vadd.f32 %v744, %v755
        %v764 = vadd.f32 %v747, %v755
        %v765 = vmax.f32 %v757, 0.0
        %v766 = vmax.f32 %v758, 0.0
        %v767 = vmax.f32 %v759, 0.0
        %v768 = vmax.f32 %v760, 0.0
        %v769 = vmax.f32 %v761, 0.0
        %v770 = vmax.f32 %v762, 0.0
        %v771 = vmax.f32 %v763, 0.0
        %v772 = vmax.f32 %v764, 0.0
        %v773 = vpack.c.bf16 %v766, %v765
        %v774 = vpack.c.bf16 %v768, %v767
        %v775 = vpack.c.bf16 %v770, %v769
        %v776 = vpack.c.bf16 %v772, %v771
        %v781 = vunpack.c.l.b16 %v773
        %v782 = vunpack.c.h.b16 %v773
        %v783 = vunpack.c.l.b16 %v774
        %v784 = vunpack.c.h.b16 %v774
        %v785 = vunpack.c.l.b16 %v775
        %v786 = vunpack.c.h.b16 %v775
        %v787 = vunpack.c.l.b16 %v776
        %v788 = vunpack.c.h.b16 %v776
        %v789 = vpack.c.b16 %v781, %v781
        %v790 = vpack.c.b16 %v782, %v782
        %v791 = vpack.c.b16 %v783, %v783
        %v792 = vpack.c.b16 %v784, %v784
        %v793 = vpack.c.b16 %v785, %v785
        %v794 = vpack.c.b16 %v786, %v786
        %v795 = vpack.c.b16 %v787, %v787
        %v796 = vpack.c.b16 %v788, %v788
        %805 = vst [vmem:[%s286] sm:$0xf] %v789
        %806 = vst [vmem:[%s286 + $0x4] sm:$0xf] %v790
        %807 = vst [vmem:[%s286 + $0x8] sm:$0xf] %v791
        %808 = vst [vmem:[%s286 + $0xc] sm:$0xf] %v792
        %809 = vst [vmem:[%s286 + $0x10] sm:$0xf] %v793
        %810 = vst [vmem:[%s286 + $0x14] sm:$0xf] %v794
        %811 = vst [vmem:[%s286 + $0x18] sm:$0xf] %v795
        %812 = vst [vmem:[%s286 + $0x1c] sm:$0xf] %v796
        %s813 = sand.u32 %s142, 1
        %s814 = scalar_lea.sflag [#allocation4], %s813
        %s815 = sand.u32 %s142, 1
        %s816 = smul.addr %s815, 32
        %s817 = scalar_lea.vmem [#allocation10], %s816
        // Predicated region
        $region57: #{tpu_custom_call.1} parent=39 // pred_check
          %p818 = pneg %p152
        $region58: #{tpu_custom_call.1} parent=39 // pred_check_branch
          %820 = sbr.rel (%p818) target = $region60
        $region59: #{tpu_custom_call.1} parent=39 // pred_region
          %s821 = smul.u32 8, %s24
          %s823 = ssub.s32 512, 512
          %824 = vsyncadd %s814, %s823
          %s825 = smul.addr %s821, 64
          %s826 = scalar_lea.hbm %s5, %s825
          %s827 = sshll.u32 %s817, 4
          %s828 = int_to_ptr.vmem [resolvable:$true] %s827
          %833 = dma.vmem_to_hbm [thread:$0]  %s828, 512, %s826, %s814, 64, 64, 4
        $region60: #{tpu_custom_call.1} parent=39 // pred_fallthru
          _
      $region40: #{tpu_custom_call.1} parent=5 // pred_fallthru
        _
      %p834 = scmp.le.s32.totalorder 2, %s19
      // Predicated region
      $region61: #{tpu_custom_call.1} parent=5 // pred_check
        %p835 = pneg %p834
      $region62: #{tpu_custom_call.1} parent=5 // pred_check_branch
        %837 = sbr.rel (%p835) target = $region64
      $region63: #{tpu_custom_call.1} parent=5 // pred_region
        %s838 = ssub.s32 %s19, 2
        // Predicated region
        $region65: #{tpu_custom_call.1} parent=63 // pred_check
          %p839 = pneg %p158
        $region66: #{tpu_custom_call.1} parent=63 // pred_check_branch
          %841 = sbr.rel (%p839) target = $region68
        $region67: #{tpu_custom_call.1} parent=63 // pred_region
          %s842 = sand.u32 %s143, 1
          %s843 = scalar_lea.sflag [#allocation4], %s842
          %s844 = sand.u32 %s143, 1
          %s845 = smul.addr %s844, 32
          %s846 = scalar_lea.vmem [#allocation10], %s845
          %847 = dma.done %s843, 512
        $region68: #{tpu_custom_call.1} parent=63 // pred_fallthru
          _
      $region64: #{tpu_custom_call.1} parent=5 // pred_fallthru
        _
    $region6: #{tpu_custom_call.1} parent=1 // loop_footer
      %s23 = sadd.s32 1, %s19
    $region7: #{tpu_custom_call.1} parent=1 // loop_footer_branch
      %18 = sbr.rel target = $region3
    $region8: #{tpu_custom_call.1} parent=1 // loop_exit
      _
    %848 = vsyncpa [#allocation3], 1
    %s849 = scalar_lea.sflag [#allocation3], 1
    %850 = vsyncpa %s849, 1
    %851 = vsyncpa [#allocation6], 1
    %s852 = scalar_lea.sflag [#allocation6], 1
    %853 = vsyncpa %s852, 1
    %854 = vsyncpa [#allocation9], 1
    %855 = vsyncpa [#allocation4], 1
    %s856 = scalar_lea.sflag [#allocation4], 1
    %857 = vsyncpa %s856, 1

</llo_original>
